<compile_context>
chip_gen: v7x
topology: tpu7x:2x2x1
jax: 0.10.0
libtpu: 0.0.40
codegen_flags: <defaults>
</compile_context>

<pallas_src>
import jax
import jax.numpy as jnp
from jax import lax
from jax.experimental import pallas as pl
from jax.experimental.pallas import tpu as pltpu


def pam_kernel(x_ref, wqkv_ref, bqkv_ref, wo_ref, bo_ref, gamma_ref, out_ref,
               qT_ref, k_ref, v3_ref, acc_ref):
    # x_ref block: (1, C, HW) channels-first.
    c4p = acc_ref.shape[0]
    n_tiles = v3_ref.shape[0]
    tq = v3_ref.shape[2]

    x = x_ref[0]                                                    # (C, HW) f32

    # Fused Q/K/V projection: (3*C4p, C) @ (C, HW) -> (3*C4p, HW), natural MXU form.
    qkv = (jnp.dot(wqkv_ref[...], x, preferred_element_type=jnp.float32)
           + bqkv_ref[...])

    # q is needed query-major for the energy LHS: one small f32 transpose per batch.
    qT_ref[...] = jnp.transpose(qkv[0:c4p, :]).astype(jnp.bfloat16)          # (HW, C4p)
    # k stays channel-major: it is the K-major RHS of the energy matmul.
    k_ref[...] = qkv[c4p:2 * c4p, :].astype(jnp.bfloat16)                    # (C4p, HW)
    # v is pre-split into query tiles (static, lane-aligned slices) so the PV
    # matmul inside the loop needs no operand relayout at all.
    for t in range(n_tiles):
        v3_ref[t] = qkv[2 * c4p:3 * c4p, t * tq:(t + 1) * tq].astype(jnp.bfloat16)

    # Scratch persists across grid steps -> must re-zero the accumulator.
    acc_ref[...] = jnp.zeros_like(acc_ref)

    def body(t, carry):
        m_prev, z_prev = carry                                      # (1, 1) f32 each
        start = pl.multiple_of(t * tq, tq)
        q_t = qT_ref[pl.ds(start, tq), :]                           # (tq, C4p) bf16

        # Energy slab for tq query rows against all HW key columns (bf16 in, f32 acc).
        e_t = jnp.dot(q_t, k_ref[...], preferred_element_type=jnp.float32)   # (tq, HW)

        # Online *global* softmax statistics (scalar max / sum, matching the
        # flattened nn.Softmax() of the PyTorch module). Attention stays
        # un-normalized here; the division is deferred past the PV matmul.
        m_new = jnp.maximum(m_prev, jnp.max(e_t))
        alpha = jnp.exp(m_prev - m_new)
        p_t = jnp.exp(e_t - m_new)                                  # (tq, HW) f32
        z_new = z_prev * alpha + jnp.sum(p_t)

        # acc[c, j] += sum_i v[c, i] * p[i, j] ; both operands already in
        # natural MXU layout, big (tq, HW) slab contracts on its major dim.
        pv = jnp.dot(v3_ref[t], p_t.astype(jnp.bfloat16),
                     preferred_element_type=jnp.float32)            # (C4p, HW)
        acc_ref[...] = acc_ref[...] * alpha + pv
        return m_new, z_new

    m0 = jnp.full((1, 1), -1e30, jnp.float32)
    z0 = jnp.zeros((1, 1), jnp.float32)
    _, z_fin = lax.fori_loop(0, n_tiles, body, (m0, z0))

    # Deferred normalization: one scale of the small (C4p, HW) accumulator.
    out_v = acc_ref[...] * pl.reciprocal(z_fin, approx=True)        # (C4p, HW)

    # Output 1x1 conv, then gamma * out + x residual; last dim HW is lane-dense.
    y = (jnp.dot(wo_ref[...], out_v, preferred_element_type=jnp.float32)
         + bo_ref[...])                                             # (C, HW)
    out_ref[0] = gamma_ref[0] * y + x


def pam_forward(x_nchw, params, *, tq=128):
    """PAM_Module.forward. x_nchw: (B, C, H, W) float32 -> (B, C, H, W)."""
    B, C, H, W = x_nchw.shape
    HW = H * W
    wq, bq, wk, bk, wv, bv, wo, bo, gamma = params
    C4 = wq.shape[0]

    # Pad the reduced channel dim to a sublane multiple; extra channels have
    # zero weights/biases so the result is bit-for-bit the same math.
    C4p = ((C4 + 7) // 8) * 8
    pad = C4p - C4
    pad_w = lambda w: jnp.pad(w, ((0, pad), (0, 0)))
    pad_b = lambda b: jnp.pad(b, (0, pad))
    w_qkv = jnp.concatenate([pad_w(wq), pad_w(wk), pad_w(wv)], axis=0)   # (3*C4p, C)
    b_qkv = jnp.concatenate([pad_b(bq), pad_b(bk), pad_b(bv)]).reshape(3 * C4p, 1)
    wo_p = jnp.pad(wo, ((0, 0), (0, pad)))                               # (C, C4p)
    bo_2 = bo.reshape(C, 1)
    gamma_1 = gamma.reshape(1).astype(jnp.float32)

    # Channels-first spatial flatten: no transposes in the wrapper.
    x_flat = x_nchw.reshape(B, C, HW)

    # Query-tile size for the streamed global softmax; fall back to one tile if
    # HW is not a multiple of the default.
    if HW % tq != 0:
        tq = HW
    n_tiles = HW // tq

    cost = pl.CostEstimate(
        flops=B * (2 * HW * C * (3 * C4p)        # fused qkv projection
                   + 4 * HW * HW * C4p           # energy + PV matmuls
                   + 2 * HW * C4p * C            # output 1x1 conv
                   + 6 * HW * C4p + 4 * C * HW), # softmax / residual elementwise
        transcendentals=B * HW * HW,             # exp of every energy entry
        bytes_accessed=4 * (2 * B * C * HW + 3 * C4p * C + 3 * C4p
                            + C * C4p + C + 1))

    const = lambda b: (0, 0)
    out_flat = pl.pallas_call(
        pam_kernel,
        out_shape=jax.ShapeDtypeStruct((B, C, HW), jnp.float32),
        grid=(B,),
        in_specs=[
            pl.BlockSpec((1, C, HW), lambda b: (b, 0, 0)),          # x
            pl.BlockSpec((3 * C4p, C), const),                      # fused W_qkv
            pl.BlockSpec((3 * C4p, 1), const),                      # fused b_qkv
            pl.BlockSpec((C, C4p), const),                          # W_out
            pl.BlockSpec((C, 1), const),                            # b_out
            pl.BlockSpec(memory_space=pltpu.MemorySpace.SMEM),      # gamma (scalar)
        ],
        out_specs=pl.BlockSpec((1, C, HW), lambda b: (b, 0, 0)),
        scratch_shapes=[
            pltpu.VMEM((HW, C4p), jnp.bfloat16),                    # q^T
            pltpu.VMEM((C4p, HW), jnp.bfloat16),                    # k
            pltpu.VMEM((n_tiles, C4p, tq), jnp.bfloat16),           # v, query-tiled
            pltpu.VMEM((C4p, HW), jnp.float32),                     # PV accumulator
        ],
        compiler_params=pltpu.CompilerParams(
            dimension_semantics=("parallel",),
            # Raise the scoped-VMEM default (16/32 MiB) while leaving headroom
            # for v7x's 64 MiB physical VMEM.
            vmem_limit_bytes=48 * 1024 * 1024),
        cost_estimate=cost,
    )(x_flat, w_qkv, b_qkv, wo_p, bo_2, gamma_1)

    return out_flat.reshape(B, C, H, W)


def pam_reference(x_nchw, params):
    """Pure-JAX reference mirroring the PyTorch forward exactly."""
    wq, bq, wk, bk, wv, bv, wo, bo, gamma = params
    B, C, H, W = x_nchw.shape
    HW = H * W

    def conv1x1(x, w, b):  # w: (O, I)
        return jnp.einsum('bchw,oc->bohw', x, w) + b[None, :, None, None]

    q = conv1x1(x_nchw, wq, bq).reshape(B, -1, HW).transpose(0, 2, 1)   # (B, HW, C4)
    k = conv1x1(x_nchw, wk, bk).reshape(B, -1, HW)                      # (B, C4, HW)
    energy = jnp.einsum('bic,bcj->bij', q, k).reshape(B, -1)            # (B, HW*HW)
    att = jax.nn.softmax(energy, axis=1).reshape(B, HW, HW)             # global softmax
    v = conv1x1(x_nchw, wv, bv).reshape(B, -1, HW)                      # (B, C4, HW)
    out = jnp.einsum('bci,bij->bcj', v, att).reshape(B, -1, H, W)
    out = conv1x1(out, wo, bo)
    return gamma.reshape(()) * out + x_nchw


if __name__ == "__main__":
    B, C, H, W = 2, 8, 16, 16
    C4 = C // 4

    key = jax.random.PRNGKey(0)
    ks = jax.random.split(key, 10)
    scale = 0.1
    wq = scale * jax.random.normal(ks[0], (C4, C), jnp.float32)
    bq = scale * jax.random.normal(ks[1], (C4,), jnp.float32)
    wk = scale * jax.random.normal(ks[2], (C4, C), jnp.float32)
    bk = scale * jax.random.normal(ks[3], (C4,), jnp.float32)
    wv = scale * jax.random.normal(ks[4], (C4, C), jnp.float32)
    bv = scale * jax.random.normal(ks[5], (C4,), jnp.float32)
    wo = scale * jax.random.normal(ks[6], (C, C4), jnp.float32)
    bo = scale * jax.random.normal(ks[7], (C,), jnp.float32)
    # The module inits gamma = 0 (identity residual); use a nonzero value so the
    # attention path actually contributes to the output being checked.
    gamma = jnp.array([0.5], jnp.float32)
    params = (wq, bq, wk, bk, wv, bv, wo, bo, gamma)

    x = jax.random.normal(ks[8], (B, C, H, W), jnp.float32)

    out = pam_forward(x, params)
    out = jax.block_until_ready(out)

    ref = pam_reference(x, params)
    assert out.shape == (B, C, H, W)
    # bf16 operands on the two HW-sized matmuls -> slightly relaxed tolerance.
    err = float(jnp.max(jnp.abs(out - ref)))
    assert jnp.allclose(out, ref, atol=1e-3, rtol=1e-3), err

    print("KERNEL_OK")
</pallas_src>

<mosaic_0001>
module attributes {stable_mosaic.version = 11 : i64} {
  func.func @pam_kernel(%arg0: i32, %arg1: memref<1x8x256xf32, #tpu.memory_space<vmem>>, %arg2: memref<24x8xf32, #tpu.memory_space<vmem>>, %arg3: memref<24x1xf32, #tpu.memory_space<vmem>>, %arg4: memref<8x8xf32, #tpu.memory_space<vmem>>, %arg5: memref<8x1xf32, #tpu.memory_space<vmem>>, %arg6: memref<1xf32, #tpu.memory_space<smem>>, %arg7: memref<1x8x256xf32, #tpu.memory_space<vmem>>, %arg8: memref<256x8xbf16, #tpu.memory_space<vmem>>, %arg9: memref<8x256xbf16, #tpu.memory_space<vmem>>, %arg10: memref<2x8x128xbf16, #tpu.memory_space<vmem>>, %arg11: memref<8x256xf32, #tpu.memory_space<vmem>>) attributes {dimension_semantics = [#tpu.dimension_semantics<parallel>], iteration_bounds = array<i64: 2>, scalar_prefetch = 0 : i64, scratch_operands = 4 : i64, tpu.core_type = #tpu.core_type<tc>, window_params = [{transform_indices = @transform_0, window_bounds = array<i64: 1, 8, 256>}, {pipeline_mode = #tpu.pipeline_mode<synchronous>, transform_indices = @transform_1, window_bounds = array<i64: 24, 8>}, {pipeline_mode = #tpu.pipeline_mode<synchronous>, transform_indices = @transform_2, window_bounds = array<i64: 24, 1>}, {pipeline_mode = #tpu.pipeline_mode<synchronous>, transform_indices = @transform_3, window_bounds = array<i64: 8, 8>}, {pipeline_mode = #tpu.pipeline_mode<synchronous>, transform_indices = @transform_4, window_bounds = array<i64: 8, 1>}, {transform_indices = @transform_5, window_bounds = array<i64: 1>}, {transform_indices = @transform_6, window_bounds = array<i64: 1, 8, 256>}]} {
    %c0 = arith.constant 0 : index
    %c0_0 = arith.constant 0 : index
    %c0_1 = arith.constant 0 : index
    %0 = vector.load %arg1[%c0, %c0_0, %c0_1] : memref<1x8x256xf32, #tpu.memory_space<vmem>>, vector<1x8x256xf32>
    %1 = vector.shape_cast %0 : vector<1x8x256xf32> to vector<8x256xf32>
    %c0_2 = arith.constant 0 : index
    %c0_3 = arith.constant 0 : index
    %2 = vector.load %arg2[%c0_2, %c0_3] : memref<24x8xf32, #tpu.memory_space<vmem>>, vector<24x8xf32>
    %cst = arith.constant dense<0.000000e+00> : vector<24x256xf32>
    %3 = tpu.matmul %2, %1, %cst {dimension_numbers = #tpu.dot_dimension_numbers<[1], [0], [0], [1], [0, 0, 1, 1], [], []>} : vector<24x8xf32>, vector<8x256xf32>, vector<24x256xf32> -> vector<24x256xf32>
    %c0_4 = arith.constant 0 : index
    %c0_5 = arith.constant 0 : index
    %4 = vector.load %arg3[%c0_4, %c0_5] : memref<24x1xf32, #tpu.memory_space<vmem>>, vector<24x1xf32>
    %5 = vector.broadcast %4 : vector<24x1xf32> to vector<24x256xf32>
    %6 = arith.addf %3, %5 : vector<24x256xf32>
    %7 = vector.extract_strided_slice %6 {offsets = [0, 0], sizes = [8, 256], strides = [1, 1]} : vector<24x256xf32> to vector<8x256xf32>
    %8 = tpu.transpose %7, [1, 0] : vector<8x256xf32> -> vector<256x8xf32>
    %9 = arith.truncf %8 : vector<256x8xf32> to vector<256x8xbf16>
    %c0_6 = arith.constant 0 : index
    %c0_7 = arith.constant 0 : index
    %10 = vector.load %arg8[%c0_6, %c0_7] : memref<256x8xbf16, #tpu.memory_space<vmem>>, vector<256x8xbf16>
    tpu.vector_store %arg8[%c0_6, %c0_7], %9 {strides = array<i32>} : memref<256x8xbf16, #tpu.memory_space<vmem>>, vector<256x8xbf16>,
    %11 = vector.extract_strided_slice %6 {offsets = [8, 0], sizes = [8, 256], strides = [1, 1]} : vector<24x256xf32> to vector<8x256xf32>
    %12 = arith.truncf %11 : vector<8x256xf32> to vector<8x256xbf16>
    %c0_8 = arith.constant 0 : index
    %c0_9 = arith.constant 0 : index
    %13 = vector.load %arg9[%c0_8, %c0_9] : memref<8x256xbf16, #tpu.memory_space<vmem>>, vector<8x256xbf16>
    tpu.vector_store %arg9[%c0_8, %c0_9], %12 {strides = array<i32>} : memref<8x256xbf16, #tpu.memory_space<vmem>>, vector<8x256xbf16>,
    %14 = vector.extract_strided_slice %6 {offsets = [16, 0], sizes = [8, 128], strides = [1, 1]} : vector<24x256xf32> to vector<8x128xf32>
    %15 = arith.truncf %14 : vector<8x128xf32> to vector<8x128xbf16>
    %c0_10 = arith.constant 0 : index
    %c0_11 = arith.constant 0 : index
    %c0_12 = arith.constant 0 : index
    %16 = vector.load %arg10[%c0_10, %c0_11, %c0_12] : memref<2x8x128xbf16, #tpu.memory_space<vmem>>, vector<1x8x128xbf16>
    %17 = vector.shape_cast %16 : vector<1x8x128xbf16> to vector<8x128xbf16>
    %18 = vector.shape_cast %15 : vector<8x128xbf16> to vector<1x8x128xbf16>
    tpu.vector_store %arg10[%c0_10, %c0_11, %c0_12], %18 {strides = array<i32>} : memref<2x8x128xbf16, #tpu.memory_space<vmem>>, vector<1x8x128xbf16>,
    %19 = vector.extract_strided_slice %6 {offsets = [16, 128], sizes = [8, 128], strides = [1, 1]} : vector<24x256xf32> to vector<8x128xf32>
    %20 = arith.truncf %19 : vector<8x128xf32> to vector<8x128xbf16>
    %c1 = arith.constant 1 : index
    %c0_13 = arith.constant 0 : index
    %c0_14 = arith.constant 0 : index
    %21 = vector.load %arg10[%c1, %c0_13, %c0_14] : memref<2x8x128xbf16, #tpu.memory_space<vmem>>, vector<1x8x128xbf16>
    %22 = vector.shape_cast %21 : vector<1x8x128xbf16> to vector<8x128xbf16>
    %23 = vector.shape_cast %20 : vector<8x128xbf16> to vector<1x8x128xbf16>
    tpu.vector_store %arg10[%c1, %c0_13, %c0_14], %23 {strides = array<i32>} : memref<2x8x128xbf16, #tpu.memory_space<vmem>>, vector<1x8x128xbf16>,
    %cst_15 = arith.constant 0.000000e+00 : f32
    %24 = vector.broadcast %cst_15 : f32 to vector<8x256xf32>
    %c0_16 = arith.constant 0 : index
    %c0_17 = arith.constant 0 : index
    %25 = vector.load %arg11[%c0_16, %c0_17] : memref<8x256xf32, #tpu.memory_space<vmem>>, vector<8x256xf32>
    tpu.vector_store %arg11[%c0_16, %c0_17], %24 {strides = array<i32>} : memref<8x256xf32, #tpu.memory_space<vmem>>, vector<8x256xf32>,
    %cst_18 = arith.constant -1.000000e+30 : f32
    %26 = vector.broadcast %cst_18 : f32 to vector<1x1xf32>
    %cst_19 = arith.constant 0.000000e+00 : f32
    %27 = vector.broadcast %cst_19 : f32 to vector<1x1xf32>
    %c0_i32 = arith.constant 0 : i32
    %c2_i32 = arith.constant 2 : i32
    %28 = arith.addi %c0_i32, %c2_i32 : i32
    %c1_i32 = arith.constant 1 : i32
    %29:2 = scf.for %arg12 = %c0_i32 to %28 step %c1_i32 iter_args(%arg13 = %26, %arg14 = %27) -> (vector<1x1xf32>, vector<1x1xf32>)  : i32 {
      %c128_i32 = arith.constant 128 : i32
      %46 = arith.muli %arg12, %c128_i32 : i32
      %47 = tpu.assume_multiple %46, 128 : i32
      %48 = arith.index_cast %47 : i32 to index
      %c0_32 = arith.constant 0 : index
      %49 = vector.load %arg8[%48, %c0_32] : memref<256x8xbf16, #tpu.memory_space<vmem>>, vector<128x8xbf16>
      %c0_33 = arith.constant 0 : index
      %c0_34 = arith.constant 0 : index
      %50 = vector.load %arg9[%c0_33, %c0_34] : memref<8x256xbf16, #tpu.memory_space<vmem>>, vector<8x256xbf16>
      %cst_35 = arith.constant dense<0.000000e+00> : vector<128x256xf32>
      %51 = tpu.matmul %49, %50, %cst_35 {dimension_numbers = #tpu.dot_dimension_numbers<[1], [0], [0], [1], [0, 0, 1, 1], [], []>} : vector<128x8xbf16>, vector<8x256xbf16>, vector<128x256xf32> -> vector<128x256xf32>
      %52 = vector.shape_cast %51 : vector<128x256xf32> to vector<1x128x256xf32>
      %cst_36 = arith.constant dense<0xFF800000> : vector<1xf32>
      %53 = vector.multi_reduction <maximumf>, %52, %cst_36 [1, 2] : vector<1x128x256xf32> to vector<1xf32>
      %54 = vector.shape_cast %53 : vector<1xf32> to vector<1x1x1xf32>
      %55 = vector.extract %54[0, 0, 0] : f32 from vector<1x1x1xf32>
      %56 = vector.broadcast %55 : f32 to vector<1x1xf32>
      %57 = arith.maximumf %arg13, %56 : vector<1x1xf32>
      %58 = arith.subf %arg13, %57 : vector<1x1xf32>
      %59 = math.exp %58 : vector<1x1xf32>
      %60 = vector.broadcast %57 : vector<1x1xf32> to vector<128x256xf32>
      %61 = arith.subf %51, %60 : vector<128x256xf32>
      %62 = math.exp %61 : vector<128x256xf32>
      %63 = arith.mulf %arg14, %59 : vector<1x1xf32>
      %64 = vector.shape_cast %62 : vector<128x256xf32> to vector<1x128x256xf32>
      %cst_37 = arith.constant dense<0.000000e+00> : vector<1xf32>
      %65 = vector.multi_reduction <add>, %64, %cst_37 [1, 2] : vector<1x128x256xf32> to vector<1xf32>
      %66 = vector.shape_cast %65 : vector<1xf32> to vector<1x1x1xf32>
      %67 = vector.extract %66[0, 0, 0] : f32 from vector<1x1x1xf32>
      %68 = vector.broadcast %67 : f32 to vector<1x1xf32>
      %69 = arith.addf %63, %68 : vector<1x1xf32>
      %70 = arith.index_cast %arg12 : i32 to index
      %c0_38 = arith.constant 0 : index
      %c0_39 = arith.constant 0 : index
      %71 = vector.load %arg10[%70, %c0_38, %c0_39] : memref<2x8x128xbf16, #tpu.memory_space<vmem>>, vector<1x8x128xbf16>
      %72 = vector.shape_cast %71 : vector<1x8x128xbf16> to vector<8x128xbf16>
      %73 = arith.truncf %62 : vector<128x256xf32> to vector<128x256xbf16>
      %cst_40 = arith.constant dense<0.000000e+00> : vector<8x256xf32>
      %74 = tpu.matmul %72, %73, %cst_40 {dimension_numbers = #tpu.dot_dimension_numbers<[1], [0], [0], [1], [0, 0, 1, 1], [], []>} : vector<8x128xbf16>, vector<128x256xbf16>, vector<8x256xf32> -> vector<8x256xf32>
      %c0_41 = arith.constant 0 : index
      %c0_42 = arith.constant 0 : index
      %75 = vector.load %arg11[%c0_41, %c0_42] : memref<8x256xf32, #tpu.memory_space<vmem>>, vector<8x256xf32>
      %76 = vector.broadcast %59 : vector<1x1xf32> to vector<8x256xf32>
      %77 = arith.mulf %75, %76 : vector<8x256xf32>
      %78 = arith.addf %77, %74 : vector<8x256xf32>
      %c0_43 = arith.constant 0 : index
      %c0_44 = arith.constant 0 : index
      %79 = vector.load %arg11[%c0_43, %c0_44] : memref<8x256xf32, #tpu.memory_space<vmem>>, vector<8x256xf32>
      tpu.vector_store %arg11[%c0_43, %c0_44], %78 {strides = array<i32>} : memref<8x256xf32, #tpu.memory_space<vmem>>, vector<8x256xf32>,
      scf.yield %57, %69 : vector<1x1xf32>, vector<1x1xf32>
    }
    %c2_i32_20 = arith.constant 2 : i32
    %c0_21 = arith.constant 0 : index
    %c0_22 = arith.constant 0 : index
    %30 = vector.load %arg11[%c0_21, %c0_22] : memref<8x256xf32, #tpu.memory_space<vmem>>, vector<8x256xf32>
    %31 = tpu.reciprocal %29#1 {approx = true} : vector<1x1xf32> -> vector<1x1xf32>
    %32 = vector.broadcast %31 : vector<1x1xf32> to vector<8x256xf32>
    %33 = arith.mulf %30, %32 : vector<8x256xf32>
    %c0_23 = arith.constant 0 : index
    %c0_24 = arith.constant 0 : index
    %34 = vector.load %arg4[%c0_23, %c0_24] : memref<8x8xf32, #tpu.memory_space<vmem>>, vector<8x8xf32>
    %cst_25 = arith.constant dense<0.000000e+00> : vector<8x256xf32>
    %35 = tpu.matmul %34, %33, %cst_25 {dimension_numbers = #tpu.dot_dimension_numbers<[1], [0], [0], [1], [0, 0, 1, 1], [], []>} : vector<8x8xf32>, vector<8x256xf32>, vector<8x256xf32> -> vector<8x256xf32>
    %c0_26 = arith.constant 0 : index
    %c0_27 = arith.constant 0 : index
    %36 = vector.load %arg5[%c0_26, %c0_27] : memref<8x1xf32, #tpu.memory_space<vmem>>, vector<8x1xf32>
    %37 = vector.broadcast %36 : vector<8x1xf32> to vector<8x256xf32>
    %38 = arith.addf %35, %37 : vector<8x256xf32>
    %c0_28 = arith.constant 0 : index
    %39 = memref.load %arg6[%c0_28] : memref<1xf32, #tpu.memory_space<smem>>
    %40 = vector.broadcast %39 : f32 to vector<8x256xf32>
    %41 = arith.mulf %40, %38 : vector<8x256xf32>
    %42 = arith.addf %41, %1 : vector<8x256xf32>
    %c0_29 = arith.constant 0 : index
    %c0_30 = arith.constant 0 : index
    %c0_31 = arith.constant 0 : index
    %43 = vector.load %arg7[%c0_29, %c0_30, %c0_31] : memref<1x8x256xf32, #tpu.memory_space<vmem>>, vector<1x8x256xf32>
    %44 = vector.shape_cast %43 : vector<1x8x256xf32> to vector<8x256xf32>
    %45 = vector.shape_cast %42 : vector<8x256xf32> to vector<1x8x256xf32>
    tpu.vector_store %arg7[%c0_29, %c0_30, %c0_31], %45 {strides = array<i32>} : memref<1x8x256xf32, #tpu.memory_space<vmem>>, vector<1x8x256xf32>,
    return
  }
  func.func @transform_0(%arg0: i32) -> (i32, i32, i32) {
    %c0_i32 = arith.constant 0 : i32
    %c0_i32_0 = arith.constant 0 : i32
    %c0_i32_1 = arith.constant 0 : i32
    return %arg0, %c0_i32, %c0_i32_0 : i32, i32, i32
  }
  func.func @transform_1(%arg0: i32) -> (i32, i32) {
    %c0_i32 = arith.constant 0 : i32
    %c0_i32_0 = arith.constant 0 : i32
    %c0_i32_1 = arith.constant 0 : i32
    return %c0_i32, %c0_i32_0 : i32, i32
  }
  func.func @transform_2(%arg0: i32) -> (i32, i32) {
    %c0_i32 = arith.constant 0 : i32
    %c0_i32_0 = arith.constant 0 : i32
    %c0_i32_1 = arith.constant 0 : i32
    return %c0_i32, %c0_i32_0 : i32, i32
  }
  func.func @transform_3(%arg0: i32) -> (i32, i32) {
    %c0_i32 = arith.constant 0 : i32
    %c0_i32_0 = arith.constant 0 : i32
    %c0_i32_1 = arith.constant 0 : i32
    return %c0_i32, %c0_i32_0 : i32, i32
  }
  func.func @transform_4(%arg0: i32) -> (i32, i32) {
    %c0_i32 = arith.constant 0 : i32
    %c0_i32_0 = arith.constant 0 : i32
    %c0_i32_1 = arith.constant 0 : i32
    return %c0_i32, %c0_i32_0 : i32, i32
  }
  func.func @transform_5(%arg0: i32) -> i32 {
    %c0_i32 = arith.constant 0 : i32
    %c0_i32_0 = arith.constant 0 : i32
    return %c0_i32 : i32
  }
  func.func @transform_6(%arg0: i32) -> (i32, i32, i32) {
    %c0_i32 = arith.constant 0 : i32
    %c0_i32_0 = arith.constant 0 : i32
    %c0_i32_1 = arith.constant 0 : i32
    return %arg0, %c0_i32, %c0_i32_0 : i32, i32, i32
  }
}

</mosaic_0001>

<llo_original>
// kernel: tpu_custom_call.1
$region0: #{tpu_custom_call.1}
  #allocation0 [shape = 'u32[]', space=smem, size = 0x4, offset = 0x4, fixed_abs, tag = 'smem constant byte address 0x4 - core index']
  #allocation1 [shape = 'u32[144,128]{1,0:T(1,128)}', space=vmem, size = 0x12000, scoped, tag = 'internal scratch']
  #allocation2 [shape = 'bf16[256,8]{1,0:T(16,128)(2,1)}', space=vmem, size = 0x10000, scoped, tag = 'scratch operand']
  #allocation3 [shape = 'bf16[8,256]{1,0:T(8,128)(2,1)}', space=vmem, size = 0x1000, scoped, tag = 'scratch operand']
  #allocation4 [shape = 'bf16[2,8,128]{2,1,0:T(8,128)(2,1)}', space=vmem, size = 0x1000, scoped, tag = 'scratch operand']
  #allocation5 [shape = 'f32[8,256]{1,0:T(8,128)}', space=vmem, size = 0x2000, scoped, tag = 'scratch operand']
  #allocation6 [shape = 'f32[1]{0:T(128)S(6)}', space=smem, size = 0x200, scoped, tag = 'scoped memory for tpu_custom_call.1']
  %s0 = inlined_call_operand.vmem [shape: f32[2,8,256], index: 0, kind: input, shape index: {}]
  %s1 = inlined_call_operand.vmem [shape: f32[24,8], index: 1, kind: input, shape index: {}]
  %s2 = inlined_call_operand.vmem [shape: f32[24,1], index: 2, kind: input, shape index: {}]
  %s3 = inlined_call_operand.vmem [shape: f32[8,8], index: 3, kind: input, shape index: {}]
  %s4 = inlined_call_operand.vmem [shape: f32[8,1], index: 4, kind: input, shape index: {}]
  %s5 = inlined_call_operand.<no memory space> [shape: f32[1], index: 5, kind: input, shape index: {}]
  %s6 = inlined_call_operand.hbm [shape: f32[2,8,256], index: 6, kind: output, shape index: {}]
  %s7 = sld [smem:[#allocation0]]
  $region64: #{tpu_custom_call.1} parent=0
    _
  %s9 = ssub.s32 1, %s7
  %s10 = scalar_select 0, %s9, %s7
  %11 = sst [smem:[#allocation6]] %s5
  $region1: #{tpu_custom_call.1} parent=0
    #allocation7 [shape = 'u8[16384]{0}', space=vmem, size = 0x4000, scoped, tag = 'output window, operand 0']
    #allocation8 [shape = 's32[2]{0}', space=sflag, size = 0x8, scoped, tag = 'scoped memory for tpu_custom_call.1']
    %12 = vsyncpa [#allocation8], 0
    %s13 = scalar_lea.sflag [#allocation8], 1
    %14 = vsyncpa %s13, 0
    loop: start=0, step=1, limit=4
    $region2: #{tpu_custom_call.1} parent=1 // loop_pre_header
      _
    $region3: #{tpu_custom_call.1} parent=1 // loop_header
      %s16 = sphi 0, %s20
      %p17 = scmp.ge.s32.totalorder %s16, 4
      %s26 = sphi 0, %s28
      %s29 = sphi 0, %s26
      %s30 = sphi 0, %s29
      %s46 = sphi 0, %s30
      %s50 = sphi 0, %s50
      %s52 = sphi 0, %s50
      %s53 = sphi 0, %s52
      %s67 = sphi 0, %s53
      %s71 = sphi 0, %s71
      %s73 = sphi 0, %s71
      %s74 = sphi 0, %s73
      %s88 = sphi 0, %s74
      %s92 = sphi 0, %s92
      %s94 = sphi 0, %s92
      %s95 = sphi 0, %s94
      %s109 = sphi 0, %s95
      %s113 = sphi 0, %s113
      %s115 = sphi 0, %s113
      %s116 = sphi 0, %s115
      %s130 = sphi 0, %s116
      %s134 = sphi 0, %s134
      %s136 = sphi 0, %s134
      %s137 = sphi 0, %s136
      %s151 = sphi 0, %s137
      %s157 = sphi 0, %s159
      %s160 = sphi 0, %s157
      %s161 = sphi 0, %s160
      %s177 = sphi 0, %s161
    $region4: #{tpu_custom_call.1} parent=1 // loop_header_branch
      %19 = sbr.rel (%p17) target = $region8
    $region5: #{tpu_custom_call.1} parent=1 // loop_body
      %s21 = ssub.s32 %s16, 1
      %s22 = ssub.s32 %s16, 2
      %s23 = sadd.s32 %s16, 1
      %s24 = ssub.s32 %s16, %s23
      %p25 = scmp.eq.s32.totalorder %s24, 0
      %s27 = sadd.s32 %s26, 1
      %s28 = scalar_select %p25, %s26, %s27
      %p31 = pneg %p25
      %p32 = scmp.eq.s32.totalorder %s16, 1
      %p33 = por %p31, %p32
      %p34 = scmp.ne.s32.totalorder %s26, %s29
      %p35 = scmp.eq.s32.totalorder %s16, 0
      %p36 = por %p34, %p35
      %p37 = scmp.ne.s32.totalorder %s26, %s29
      %p38 = scmp.eq.s32.totalorder %s21, 1
      %p39 = por %p37, %p38
      %p40 = scmp.ne.s32.totalorder %s29, %s30
      %p41 = scmp.eq.s32.totalorder %s21, 0
      %p42 = por %p40, %p41
      %p43 = scmp.ne.s32.totalorder %s29, %s30
      %p44 = scmp.eq.s32.totalorder %s22, 1
      %p45 = por %p43, %p44
      %p47 = scmp.ne.s32.totalorder %s30, %s46
      %p48 = scmp.eq.s32.totalorder %s22, 0
      %p49 = por %p47, %p48
      %s51 = sadd.s32 %s50, 1
      %p54 = scmp.eq.s32.totalorder %s16, 1
      %p55 = scmp.ne.s32.totalorder %s50, %s52
      %p56 = scmp.eq.s32.totalorder %s16, 0
      %p57 = por %p55, %p56
      %p58 = scmp.ne.s32.totalorder %s50, %s52
      %p59 = scmp.eq.s32.totalorder %s21, 1
      %p60 = por %p58, %p59
      %p61 = scmp.ne.s32.totalorder %s52, %s53
      %p62 = scmp.eq.s32.totalorder %s21, 0
      %p63 = por %p61, %p62
      %p64 = scmp.ne.s32.totalorder %s52, %s53
      %p65 = scmp.eq.s32.totalorder %s22, 1
      %p66 = por %p64, %p65
      %p68 = scmp.ne.s32.totalorder %s53, %s67
      %p69 = scmp.eq.s32.totalorder %s22, 0
      %p70 = por %p68, %p69
      %s72 = sadd.s32 %s71, 1
      %p75 = scmp.eq.s32.totalorder %s16, 1
      %p76 = scmp.ne.s32.totalorder %s71, %s73
      %p77 = scmp.eq.s32.totalorder %s16, 0
      %p78 = por %p76, %p77
      %p79 = scmp.ne.s32.totalorder %s71, %s73
      %p80 = scmp.eq.s32.totalorder %s21, 1
      %p81 = por %p79, %p80
      %p82 = scmp.ne.s32.totalorder %s73, %s74
      %p83 = scmp.eq.s32.totalorder %s21, 0
      %p84 = por %p82, %p83
      %p85 = scmp.ne.s32.totalorder %s73, %s74
      %p86 = scmp.eq.s32.totalorder %s22, 1
      %p87 = por %p85, %p86
      %p89 = scmp.ne.s32.totalorder %s74, %s88
      %p90 = scmp.eq.s32.totalorder %s22, 0
      %p91 = por %p89, %p90
      %s93 = sadd.s32 %s92, 1
      %p96 = scmp.eq.s32.totalorder %s16, 1
      %p97 = scmp.ne.s32.totalorder %s92, %s94
      %p98 = scmp.eq.s32.totalorder %s16, 0
      %p99 = por %p97, %p98
      %p100 = scmp.ne.s32.totalorder %s92, %s94
      %p101 = scmp.eq.s32.totalorder %s21, 1
      %p102 = por %p100, %p101
      %p103 = scmp.ne.s32.totalorder %s94, %s95
      %p104 = scmp.eq.s32.totalorder %s21, 0
      %p105 = por %p103, %p104
      %p106 = scmp.ne.s32.totalorder %s94, %s95
      %p107 = scmp.eq.s32.totalorder %s22, 1
      %p108 = por %p106, %p107
      %p110 = scmp.ne.s32.totalorder %s95, %s109
      %p111 = scmp.eq.s32.totalorder %s22, 0
      %p112 = por %p110, %p111
      %s114 = sadd.s32 %s113, 1
      %p117 = scmp.eq.s32.totalorder %s16, 1
      %p118 = scmp.ne.s32.totalorder %s113, %s115
      %p119 = scmp.eq.s32.totalorder %s16, 0
      %p120 = por %p118, %p119
      %p121 = scmp.ne.s32.totalorder %s113, %s115
      %p122 = scmp.eq.s32.totalorder %s21, 1
      %p123 = por %p121, %p122
      %p124 = scmp.ne.s32.totalorder %s115, %s116
      %p125 = scmp.eq.s32.totalorder %s21, 0
      %p126 = por %p124, %p125
      %p127 = scmp.ne.s32.totalorder %s115, %s116
      %p128 = scmp.eq.s32.totalorder %s22, 1
      %p129 = por %p127, %p128
      %p131 = scmp.ne.s32.totalorder %s116, %s130
      %p132 = scmp.eq.s32.totalorder %s22, 0
      %p133 = por %p131, %p132
      %s135 = sadd.s32 %s134, 1
      %p138 = scmp.eq.s32.totalorder %s16, 1
      %p139 = scmp.ne.s32.totalorder %s134, %s136
      %p140 = scmp.eq.s32.totalorder %s16, 0
      %p141 = por %p139, %p140
      %p142 = scmp.ne.s32.totalorder %s134, %s136
      %p143 = scmp.eq.s32.totalorder %s21, 1
      %p144 = por %p142, %p143
      %p145 = scmp.ne.s32.totalorder %s136, %s137
      %p146 = scmp.eq.s32.totalorder %s21, 0
      %p147 = por %p145, %p146
      %p148 = scmp.ne.s32.totalorder %s136, %s137
      %p149 = scmp.eq.s32.totalorder %s22, 1
      %p150 = por %p148, %p149
      %p152 = scmp.ne.s32.totalorder %s137, %s151
      %p153 = scmp.eq.s32.totalorder %s22, 0
      %p154 = por %p152, %p153
      %s155 = ssub.s32 %s16, %s23
      %p156 = scmp.eq.s32.totalorder %s155, 0
      %s158 = sadd.s32 %s157, 1
      %s159 = scalar_select %p156, %s157, %s158
      %p162 = pneg %p156
      %p163 = scmp.eq.s32.totalorder %s16, 1
      %p164 = por %p162, %p163
      %p165 = scmp.ne.s32.totalorder %s157, %s160
      %p166 = scmp.eq.s32.totalorder %s16, 0
      %p167 = por %p165, %p166
      %p168 = scmp.ne.s32.totalorder %s157, %s160
      %p169 = scmp.eq.s32.totalorder %s21, 1
      %p170 = por %p168, %p169
      %p171 = scmp.ne.s32.totalorder %s160, %s161
      %p172 = scmp.eq.s32.totalorder %s21, 0
      %p173 = por %p171, %p172
      %p174 = scmp.ne.s32.totalorder %s160, %s161
      %p175 = scmp.eq.s32.totalorder %s22, 1
      %p176 = por %p174, %p175
      %p178 = scmp.ne.s32.totalorder %s161, %s177
      %p179 = scmp.eq.s32.totalorder %s22, 0
      %p180 = por %p178, %p179
      %p181 = scmp.le.s32.totalorder 1, %s16
      %p182 = scmp.lt.s32.totalorder %s16, 3
      %p183 = pnand %p181, %p182
      %p184 = pneg %p183
      // Predicated region
      $region9: #{tpu_custom_call.1} parent=5 // pred_check
        _
      $region10: #{tpu_custom_call.1} parent=5 // pred_check_branch
        %186 = sbr.rel (%p183) target = $region12
      $region11: #{tpu_custom_call.1} parent=5 // pred_region
        %s187 = ssub.s32 %s16, 1
        // Predicated region
        $region13: #{tpu_custom_call.1} parent=11 // pred_check
          %p188 = pneg %p63
        $region14: #{tpu_custom_call.1} parent=11 // pred_check_branch
          %190 = sbr.rel (%p188) target = $region16
        $region15: #{tpu_custom_call.1} parent=11 // pred_region
          _
        $region16: #{tpu_custom_call.1} parent=11 // pred_fallthru
          _
        // Predicated region
        $region17: #{tpu_custom_call.1} parent=11 // pred_check
          %p191 = pneg %p84
        $region18: #{tpu_custom_call.1} parent=11 // pred_check_branch
          %193 = sbr.rel (%p191) target = $region20
        $region19: #{tpu_custom_call.1} parent=11 // pred_region
          _
        $region20: #{tpu_custom_call.1} parent=11 // pred_fallthru
          _
        // Predicated region
        $region21: #{tpu_custom_call.1} parent=11 // pred_check
          %p194 = pneg %p105
        $region22: #{tpu_custom_call.1} parent=11 // pred_check_branch
          %196 = sbr.rel (%p194) target = $region24
        $region23: #{tpu_custom_call.1} parent=11 // pred_region
          _
        $region24: #{tpu_custom_call.1} parent=11 // pred_fallthru
          _
        // Predicated region
        $region25: #{tpu_custom_call.1} parent=11 // pred_check
          %p197 = pneg %p126
        $region26: #{tpu_custom_call.1} parent=11 // pred_check_branch
          %199 = sbr.rel (%p197) target = $region28
        $region27: #{tpu_custom_call.1} parent=11 // pred_region
          _
        $region28: #{tpu_custom_call.1} parent=11 // pred_fallthru
          _
        // Predicated region
        $region29: #{tpu_custom_call.1} parent=11 // pred_check
          %p200 = pneg %p147
        $region30: #{tpu_custom_call.1} parent=11 // pred_check_branch
          %202 = sbr.rel (%p200) target = $region32
        $region31: #{tpu_custom_call.1} parent=11 // pred_region
          _
        $region32: #{tpu_custom_call.1} parent=11 // pred_fallthru
          _
      $region12: #{tpu_custom_call.1} parent=5 // pred_fallthru
        _
      %p203 = scmp.lt.s32.totalorder %s16, 2
      // Predicated region
      $region33: #{tpu_custom_call.1} parent=5 // pred_check
        %p204 = pneg %p203
      $region34: #{tpu_custom_call.1} parent=5 // pred_check_branch
        %206 = sbr.rel (%p204) target = $region36
      $region35: #{tpu_custom_call.1} parent=5 // pred_region
        // Predicated region
        $region37: #{tpu_custom_call.1} parent=35 // pred_check
          %p207 = pneg %p36
        $region38: #{tpu_custom_call.1} parent=35 // pred_check_branch
          %209 = sbr.rel (%p207) target = $region40
        $region39: #{tpu_custom_call.1} parent=35 // pred_region
          %p210 = scmp.lt.s32.totalorder %s16, 1
          %s211 = scalar_select %p210, %s16, 1
          %s212 = smul.addr %s211, 2
          %s213 = smul.addr %s212, 8
          %s214 = scalar_lea.vmem %s0, %s213
        $region40: #{tpu_custom_call.1} parent=35 // pred_fallthru
          _
      $region36: #{tpu_custom_call.1} parent=5 // pred_fallthru
        _
      %p215 = scmp.le.s32.totalorder 1, %s16
      %p216 = scmp.lt.s32.totalorder %s16, 3
      %p217 = pnand %p215, %p216
      %p218 = pneg %p217
      // Predicated region
      $region41: #{tpu_custom_call.1} parent=5 // pred_check
        _
      $region42: #{tpu_custom_call.1} parent=5 // pred_check_branch
        %220 = sbr.rel (%p217) target = $region44
      $region43: #{tpu_custom_call.1} parent=5 // pred_region
        %s221 = ssub.s32 %s16, 1
        %p222 = scmp.lt.s32.totalorder %s21, 1
        %s223 = scalar_select %p222, %s21, 1
        %s224 = smul.addr %s223, 2
        %s225 = smul.addr %s224, 8
        %s226 = scalar_lea.vmem %s0, %s225
        %p227 = pneg %p42
        %p228 = pneg %p39
        %p229 = pneg %p63
        %p230 = pneg %p60
        %p231 = pneg %p84
        %p232 = pneg %p81
        %p233 = pneg %p105
        %p234 = pneg %p102
        %p235 = pneg %p126
        %p236 = pneg %p123
        %p237 = pneg %p147
        %p238 = pneg %p144
        %p239 = pneg %p173
        %p240 = pneg %p170
        %s241 = sand.u32 %s160, 1
        %s242 = scalar_lea.sflag [#allocation8], %s241
        %s243 = sand.u32 %s160, 1
        %s244 = smul.addr %s243, 16
        %s245 = scalar_lea.vmem [#allocation7], %s244
        %p246 = scmp.lt.s32.totalorder %s21, 1
        %s247 = scalar_select %p246, %s21, 1
        %s248 = smul.addr %s247, 2
        %s249 = smul.addr %s248, 8
        %s250 = scalar_lea.vmem %s0, %s249
        %v252 = vld [vmem:[%s250] sm:$0xff]
        %v253 = vld [vmem:[%s250 + $0x8] sm:$0xff]
        %v254 = vld [vmem:[%s1] sm:$0xff]
        %v255 = vld [vmem:[%s1 + $0x8] sm:$0xff]
        %v256 = vld [vmem:[%s1 + $0x10] sm:$0xff]
        %v257 = vld [vmem:[%s2] sm:$0xff]
        %v258 = vld [vmem:[%s2 + $0x8] sm:$0xff]
        %v259 = vld [vmem:[%s2 + $0x10] sm:$0xff]
        %261 = vset.pattern.permute.xlu0 0
        %262 = vperm.xlu0 %261, %v257
        %v263 = vpop.permute.xlu0 %262
        %266 = vset.pattern.permute.xlu0 0
        %267 = vperm.xlu0 %266, %v258
        %v268 = vpop.permute.xlu0 %267
        %271 = vset.pattern.permute.xlu0 0
        %272 = vperm.xlu0 %271, %v259
        %v273 = vpop.permute.xlu0 %272
        %vm275 = vcmask 64512
        %v277 = vsel %vm275, %v254, 0
        %v280 = vsel %vm275, %v255, 0
        %v283 = vsel %vm275, %v256, 0
        %285 = vmatprep.subr.mxu0 %v253
        %286 = vmatpush1.msra.mxu0 %v252
        %287 = vmatprep.subr.mxu0 0.0
        %288 = vmatpush1.msra.mxu0 0.0
        %289 = vmatprep.subr.mxu0 0.0
        %290 = vmatpush1.msra.mxu0 0.0
        %291 = vmatprep.subr.mxu0 0.0
        %292 = vmatpush1.msra.mxu0 0.0
        %293 = vmatprep.subr.mxu0 0.0
        %294 = vmatpush1.msra.mxu0 0.0
        %295 = vmatprep.subr.mxu0 0.0
        %296 = vmatpush1.msra.mxu0 0.0
        %297 = vmatprep.subr.mxu0 0.0
        %298 = vmatpush1.msra.mxu0 0.0
        %299 = vmatprep.subr.mxu0 0.0
        %300 = vmatpush1.msra.mxu0 0.0
        %301 = vmatprep.subr.mxu0 0.0
        %302 = vmatpush1.msra.mxu0 0.0
        %303 = vmatprep.subr.mxu0 0.0
        %304 = vmatpush1.msra.mxu0 0.0
        %305 = vmatprep.subr.mxu0 0.0
        %306 = vmatpush1.msra.mxu0 0.0
        %307 = vmatprep.subr.mxu0 0.0
        %308 = vmatpush1.msra.mxu0 0.0
        %309 = vmatprep.subr.mxu0 0.0
        %310 = vmatpush1.msra.mxu0 0.0
        %311 = vmatprep.subr.mxu0 0.0
        %312 = vmatpush1.msra.mxu0 0.0
        %313 = vmatprep.subr.mxu0 0.0
        %314 = vmatpush1.msra.mxu0 0.0
        %315 = vmatprep.subr.mxu0 0.0
        %316 = vmatpush1.msra.mxu0 0.0
        %317 = vmatprep.subr.mxu0 0.0
        %318 = vmatpush1.msra.mxu0 0.0
        %319 = vmatprep.subr.mxu0 0.0
        %320 = vmatpush1.msra.mxu0 0.0
        %321 = vmatprep.subr.mxu0 0.0
        %322 = vmatpush1.msra.mxu0 0.0
        %323 = vmatprep.subr.mxu0 0.0
        %324 = vmatpush1.msra.mxu0 0.0
        %325 = vmatprep.subr.mxu0 0.0
        %326 = vmatpush1.msra.mxu0 0.0
        %327 = vmatprep.subr.mxu0 0.0
        %328 = vmatpush1.msra.mxu0 0.0
        %329 = vmatprep.subr.mxu0 0.0
        %330 = vmatpush1.msra.mxu0 0.0
        %331 = vmatprep.subr.mxu0 0.0
        %332 = vmatpush1.msra.mxu0 0.0
        %333 = vmatprep.subr.mxu0 0.0
        %334 = vmatpush1.msra.mxu0 0.0
        %335 = vmatprep.subr.mxu0 0.0
        %336 = vmatpush1.msra.mxu0 0.0
        %337 = vmatprep.subr.mxu0 0.0
        %338 = vmatpush1.msra.mxu0 0.0
        %339 = vmatprep.subr.mxu0 0.0
        %340 = vmatpush1.msra.mxu0 0.0
        %341 = vmatprep.subr.mxu0 0.0
        %342 = vmatpush1.msra.mxu0 0.0
        %343 = vmatprep.subr.mxu0 0.0
        %344 = vmatpush1.msra.mxu0 0.0
        %345 = vmatprep.subr.mxu0 0.0
        %346 = vmatpush1.msra.mxu0 0.0
        %347 = vmatprep.subr.mxu0 0.0
        %348 = vmatpush1.msra.mxu0 0.0
        %349 = vmatprep.mubr.f32.mxu0 0.0
        %350 = vmatmul.mubr.f32.gmra.mrb[0].mxu0 %v277
        %v351 = vpop.f32.mrb[0].mxu0
        %v352 = vadd.f32 %v263, %v351
        %v353 = vpop.f32.mrb[0].mxu0
        %v354 = vadd.f32 %v263, %v353
        %355 = vmatprep.mubr.f32.mxu0 0.0
        %356 = vmatmul.mubr.f32.gmra.mrb[0].mxu0 %v280
        %v357 = vpop.f32.mrb[0].mxu0
        %v358 = vadd.f32 %v268, %v357
        %v359 = vpop.f32.mrb[0].mxu0
        %v360 = vadd.f32 %v268, %v359
        %361 = vmatprep.mubr.f32.mxu0 0.0
        %362 = vmatmul.mubr.f32.gmra.mrb[0].mxu0 %v283
        %v363 = vpop.f32.mrb[0].mxu0
        %v364 = vadd.f32 %v273, %v363
        %v365 = vpop.f32.mrb[0].mxu0
        %v366 = vadd.f32 %v273, %v365
        %367 = vdwg.mxu0
        %368 = vxpose.xlu0.b32.start [1/16] %v352, 128
        %369 = vxpose.xlu0.b32.cont [2/16] 0.0, 128
        %370 = vxpose.xlu0.b32.cont [3/16] 0.0, 128
        %371 = vxpose.xlu0.b32.cont [4/16] 0.0, 128
        %372 = vxpose.xlu0.b32.cont [5/16] 0.0, 128
        %373 = vxpose.xlu0.b32.cont [6/16] 0.0, 128
        %374 = vxpose.xlu0.b32.cont [7/16] 0.0, 128
        %375 = vxpose.xlu0.b32.cont [8/16] 0.0, 128
        %376 = vxpose.xlu0.b32.cont [9/16] 0.0, 128
        %377 = vxpose.xlu0.b32.cont [10/16] 0.0, 128
        %378 = vxpose.xlu0.b32.cont [11/16] 0.0, 128
        %379 = vxpose.xlu0.b32.cont [12/16] 0.0, 128
        %380 = vxpose.xlu0.b32.cont [13/16] 0.0, 128
        %381 = vxpose.xlu0.b32.cont [14/16] 0.0, 128
        %382 = vxpose.xlu0.b32.cont [15/16] 0.0, 128
        %383 = vxpose.xlu0.b32.end [16/16] 0.0, 128
        %v384 = vpop.trf.xlu0
        %v385 = vpop.trf.xlu0
        %v386 = vpop.trf.xlu0
        %v387 = vpop.trf.xlu0
        %v388 = vpop.trf.xlu0
        %v389 = vpop.trf.xlu0
        %v390 = vpop.trf.xlu0
        %v391 = vpop.trf.xlu0
        %v392 = vpop.trf.xlu0
        %v393 = vpop.trf.xlu0
        %v394 = vpop.trf.xlu0
        %v395 = vpop.trf.xlu0
        %v396 = vpop.trf.xlu0
        %v397 = vpop.trf.xlu0
        %v398 = vpop.trf.xlu0
        %v399 = vpop.trf.xlu0
        %400 = vxpose.xlu0.b32.start [1/16] %v354, 128
        %401 = vxpose.xlu0.b32.cont [2/16] 0.0, 128
        %402 = vxpose.xlu0.b32.cont [3/16] 0.0, 128
        %403 = vxpose.xlu0.b32.cont [4/16] 0.0, 128
        %404 = vxpose.xlu0.b32.cont [5/16] 0.0, 128
        %405 = vxpose.xlu0.b32.cont [6/16] 0.0, 128
        %406 = vxpose.xlu0.b32.cont [7/16] 0.0, 128
        %407 = vxpose.xlu0.b32.cont [8/16] 0.0, 128
        %408 = vxpose.xlu0.b32.cont [9/16] 0.0, 128
        %409 = vxpose.xlu0.b32.cont [10/16] 0.0, 128
        %410 = vxpose.xlu0.b32.cont [11/16] 0.0, 128
        %411 = vxpose.xlu0.b32.cont [12/16] 0.0, 128
        %412 = vxpose.xlu0.b32.cont [13/16] 0.0, 128
        %413 = vxpose.xlu0.b32.cont [14/16] 0.0, 128
        %414 = vxpose.xlu0.b32.cont [15/16] 0.0, 128
        %415 = vxpose.xlu0.b32.end [16/16] 0.0, 128
        %v416 = vpop.trf.xlu0
        %v417 = vpop.trf.xlu0
        %v418 = vpop.trf.xlu0
        %v419 = vpop.trf.xlu0
        %v420 = vpop.trf.xlu0
        %v421 = vpop.trf.xlu0
        %v422 = vpop.trf.xlu0
        %v423 = vpop.trf.xlu0
        %v424 = vpop.trf.xlu0
        %v425 = vpop.trf.xlu0
        %v426 = vpop.trf.xlu0
        %v427 = vpop.trf.xlu0
        %v428 = vpop.trf.xlu0
        %v429 = vpop.trf.xlu0
        %v430 = vpop.trf.xlu0
        %v431 = vpop.trf.xlu0
        %v432 = vpack.c.bf16 %v385, %v384
        %v433 = vpack.c.bf16 %v387, %v386
        %v434 = vpack.c.bf16 %v389, %v388
        %v435 = vpack.c.bf16 %v391, %v390
        %v436 = vpack.c.bf16 %v393, %v392
        %v437 = vpack.c.bf16 %v395, %v394
        %v438 = vpack.c.bf16 %v397, %v396
        %v439 = vpack.c.bf16 %v399, %v398
        %v440 = vpack.c.bf16 %v417, %v416
        %v441 = vpack.c.bf16 %v419, %v418
        %v442 = vpack.c.bf16 %v421, %v420
        %v443 = vpack.c.bf16 %v423, %v422
        %v444 = vpack.c.bf16 %v425, %v424
        %v445 = vpack.c.bf16 %v427, %v426
        %v446 = vpack.c.bf16 %v429, %v428
        %v447 = vpack.c.bf16 %v431, %v430
        %448 = vst.msk [vmem:[#allocation2] sm:$0xff] %vm275, %v432
        %449 = vst.msk [vmem:[#allocation2 + $0x8] sm:$0xff] %vm275, %v433
        %450 = vst.msk [vmem:[#allocation2 + $0x10] sm:$0xff] %vm275, %v434
        %451 = vst.msk [vmem:[#allocation2 + $0x18] sm:$0xff] %vm275, %v435
        %452 = vst.msk [vmem:[#allocation2 + $0x20] sm:$0xff] %vm275, %v436
        %453 = vst.msk [vmem:[#allocation2 + $0x28] sm:$0xff] %vm275, %v437
        %454 = vst.msk [vmem:[#allocation2 + $0x30] sm:$0xff] %vm275, %v438
        %455 = vst.msk [vmem:[#allocation2 + $0x38] sm:$0xff] %vm275, %v439
        %456 = vst.msk [vmem:[#allocation2 + $0x40] sm:$0xff] %vm275, %v440
        %457 = vst.msk [vmem:[#allocation2 + $0x48] sm:$0xff] %vm275, %v441
        %458 = vst.msk [vmem:[#allocation2 + $0x50] sm:$0xff] %vm275, %v442
        %459 = vst.msk [vmem:[#allocation2 + $0x58] sm:$0xff] %vm275, %v443
        %460 = vst.msk [vmem:[#allocation2 + $0x60] sm:$0xff] %vm275, %v444
        %461 = vst.msk [vmem:[#allocation2 + $0x68] sm:$0xff] %vm275, %v445
        %462 = vst.msk [vmem:[#allocation2 + $0x70] sm:$0xff] %vm275, %v446
        %463 = vst.msk [vmem:[#allocation2 + $0x78] sm:$0xff] %vm275, %v447
        %v464 = vpack.c.bf16 %v358, %v358
        %v465 = vpack.c.bf16 %v360, %v360
        %v468 = vunpack.c.l.b16 %v464
        %v469 = vunpack.c.l.b16 %v465
        %v470 = vpack.c.b16 %v469, %v468
        %472 = vst [vmem:[#allocation3] sm:$0xff] %v470
        %v473 = vpack.c.bf16 %v364, %v364
        %474 = vst [vmem:[#allocation4] sm:$0xf] %v473
        %v475 = vpack.c.bf16 %v366, %v366
        %s476 = scalar_lea.vmem [#allocation4], 4
        %477 = vst [vmem:[%s476] sm:$0xf] %v475
        %478 = vst [vmem:[#allocation5] sm:$0xff] 0.0
        %479 = vst [vmem:[#allocation5 + $0x8] sm:$0xff] 0.0
        loop: start=0, step=1, limit=2
        $region45: #{tpu_custom_call.1} parent=43 // loop_pre_header
          _
        $region46: #{tpu_custom_call.1} parent=43 // loop_header
          %s481 = sphi 0, %s485
          %p482 = scmp.ge.s32.totalorder %s481, 2
          %v486 = vphi -1e+30, %v692
          %v487 = vphi 0.0, %v834
        $region47: #{tpu_custom_call.1} parent=43 // loop_header_branch
          %484 = sbr.rel (%p482) target = $region51
        $region48: #{tpu_custom_call.1} parent=43 // loop_body
          %s488 = smul.u32 %s481, 128
          %s489 = sshra.s32 %s488, 4
          %s490 = sand.u32 %s488, 15
          %s491 = smul.addr %s489, 8
          %s492 = scalar_lea.vmem [#allocation2], %s491
          %v493 = vld [vmem:[%s492] sm:$0xff]
          %v494 = vld [vmem:[%s492 + $0x8] sm:$0xff]
          %v495 = vld [vmem:[%s492 + $0x10] sm:$0xff]
          %v496 = vld [vmem:[%s492 + $0x18] sm:$0xff]
          %v497 = vld [vmem:[%s492 + $0x20] sm:$0xff]
          %v498 = vld [vmem:[%s492 + $0x28] sm:$0xff]
          %v499 = vld [vmem:[%s492 + $0x30] sm:$0xff]
          %v500 = vld [vmem:[%s492 + $0x38] sm:$0xff]
          %v501 = vld [vmem:[#allocation3] sm:$0xff]
          %v503 = vunpack.c.l.b16 %v501
          %v504 = vunpack.c.h.b16 %v501
          %v505 = vpack.c.b16 %v503, %v503
          %v506 = vpack.c.b16 %v504, %v504
          %v508 = vsel %vm275, %v493, 0
          %v511 = vsel %vm275, %v494, 0
          %v514 = vsel %vm275, %v495, 0
          %v517 = vsel %vm275, %v496, 0
          %v520 = vsel %vm275, %v497, 0
          %v523 = vsel %vm275, %v498, 0
          %v526 = vsel %vm275, %v499, 0
          %v529 = vsel %vm275, %v500, 0
          %vm531 = vcmask 1043456
          %v533 = vsel %vm531, %v505, 0
          %v536 = vsel %vm531, %v506, 0
          %538 = vmatprep.subr.bf16.mxu0 %v536
          %539 = vmatpush1.bf16.msra.mxu0 %v533
          %540 = vmatprep.subr.bf16.mxu0 0
          %541 = vmatpush1.bf16.msra.mxu0 0
          %542 = vmatprep.subr.bf16.mxu0 0
          %543 = vmatpush1.bf16.msra.mxu0 0
          %544 = vmatprep.subr.bf16.mxu0 0
          %545 = vmatpush1.bf16.msra.mxu0 0
          %546 = vmatprep.subr.bf16.mxu0 0
          %547 = vmatpush1.bf16.msra.mxu0 0
          %548 = vmatprep.subr.bf16.mxu0 0
          %549 = vmatpush1.bf16.msra.mxu0 0
          %550 = vmatprep.subr.bf16.mxu0 0
          %551 = vmatpush1.bf16.msra.mxu0 0
          %552 = vmatprep.subr.bf16.mxu0 0
          %553 = vmatpush1.bf16.msra.mxu0 0
          %554 = vmatprep.subr.bf16.mxu0 0
          %555 = vmatpush1.bf16.msra.mxu0 0
          %556 = vmatprep.subr.bf16.mxu0 0
          %557 = vmatpush1.bf16.msra.mxu0 0
          %558 = vmatprep.subr.bf16.mxu0 0
          %559 = vmatpush1.bf16.msra.mxu0 0
          %560 = vmatprep.subr.bf16.mxu0 0
          %561 = vmatpush1.bf16.msra.mxu0 0
          %562 = vmatprep.subr.bf16.mxu0 0
          %563 = vmatpush1.bf16.msra.mxu0 0
          %564 = vmatprep.subr.bf16.mxu0 0
          %565 = vmatpush1.bf16.msra.mxu0 0
          %566 = vmatprep.subr.bf16.mxu0 0
          %567 = vmatpush1.bf16.msra.mxu0 0
          %568 = vmatprep.subr.bf16.mxu0 0
          %569 = vmatpush1.bf16.msra.mxu0 0
          %570 = vmatprep.mubr.bf16.mxu0 0
          %571 = vmatmul.mubr.bf16.gmra.mrb[0].mxu0 %v508
          %v572 = vpop.f32.mrb[0].mxu0
          %v573 = vadd.f32 0.0, %v572
          %v574 = vpop.f32.mrb[0].mxu0
          %v575 = vadd.f32 0.0, %v574
          %v576 = vpop.f32.mrb[0].mxu0
          %v577 = vadd.f32 0.0, %v576
          %v578 = vpop.f32.mrb[0].mxu0
          %v579 = vadd.f32 0.0, %v578
          %580 = vmatprep.mubr.bf16.mxu0 0
          %581 = vmatmul.mubr.bf16.gmra.mrb[0].mxu0 %v511
          %v582 = vpop.f32.mrb[0].mxu0
          %v583 = vadd.f32 0.0, %v582
          %v584 = vpop.f32.mrb[0].mxu0
          %v585 = vadd.f32 0.0, %v584
          %v586 = vpop.f32.mrb[0].mxu0
          %v587 = vadd.f32 0.0, %v586
          %v588 = vpop.f32.mrb[0].mxu0
          %v589 = vadd.f32 0.0, %v588
          %590 = vmatprep.mubr.bf16.mxu0 0
          %591 = vmatmul.mubr.bf16.gmra.mrb[0].mxu0 %v514
          %v592 = vpop.f32.mrb[0].mxu0
          %v593 = vadd.f32 0.0, %v592
          %v594 = vpop.f32.mrb[0].mxu0
          %v595 = vadd.f32 0.0, %v594
          %v596 = vpop.f32.mrb[0].mxu0
          %v597 = vadd.f32 0.0, %v596
          %v598 = vpop.f32.mrb[0].mxu0
          %v599 = vadd.f32 0.0, %v598
          %600 = vmatprep.mubr.bf16.mxu0 0
          %601 = vmatmul.mubr.bf16.gmra.mrb[0].mxu0 %v517
          %v602 = vpop.f32.mrb[0].mxu0
          %v603 = vadd.f32 0.0, %v602
          %v604 = vpop.f32.mrb[0].mxu0
          %v605 = vadd.f32 0.0, %v604
          %v606 = vpop.f32.mrb[0].mxu0
          %v607 = vadd.f32 0.0, %v606
          %v608 = vpop.f32.mrb[0].mxu0
          %v609 = vadd.f32 0.0, %v608
          %610 = vmatprep.mubr.bf16.mxu0 0
          %611 = vmatmul.mubr.bf16.gmra.mrb[0].mxu0 %v520
          %v612 = vpop.f32.mrb[0].mxu0
          %v613 = vadd.f32 0.0, %v612
          %v614 = vpop.f32.mrb[0].mxu0
          %v615 = vadd.f32 0.0, %v614
          %v616 = vpop.f32.mrb[0].mxu0
          %v617 = vadd.f32 0.0, %v616
          %v618 = vpop.f32.mrb[0].mxu0
          %v619 = vadd.f32 0.0, %v618
          %620 = vmatprep.mubr.bf16.mxu0 0
          %621 = vmatmul.mubr.bf16.gmra.mrb[0].mxu0 %v523
          %v622 = vpop.f32.mrb[0].mxu0
          %v623 = vadd.f32 0.0, %v622
          %v624 = vpop.f32.mrb[0].mxu0
          %v625 = vadd.f32 0.0, %v624
          %v626 = vpop.f32.mrb[0].mxu0
          %v627 = vadd.f32 0.0, %v626
          %v628 = vpop.f32.mrb[0].mxu0
          %v629 = vadd.f32 0.0, %v628
          %630 = vmatprep.mubr.bf16.mxu0 0
          %631 = vmatmul.mubr.bf16.gmra.mrb[0].mxu0 %v526
          %v632 = vpop.f32.mrb[0].mxu0
          %v633 = vadd.f32 0.0, %v632
          %v634 = vpop.f32.mrb[0].mxu0
          %v635 = vadd.f32 0.0, %v634
          %v636 = vpop.f32.mrb[0].mxu0
          %v637 = vadd.f32 0.0, %v636
          %v638 = vpop.f32.mrb[0].mxu0
          %v639 = vadd.f32 0.0, %v638
          %640 = vmatprep.mubr.bf16.mxu0 0
          %641 = vmatmul.mubr.bf16.gmra.mrb[0].mxu0 %v529
          %v642 = vpop.f32.mrb[0].mxu0
          %v643 = vadd.f32 0.0, %v642
          %v644 = vpop.f32.mrb[0].mxu0
          %v645 = vadd.f32 0.0, %v644
          %v646 = vpop.f32.mrb[0].mxu0
          %v647 = vadd.f32 0.0, %v646
          %v648 = vpop.f32.mrb[0].mxu0
          %v649 = vadd.f32 0.0, %v648
          %650 = vdwg.mxu0
          %v651 = vmax.f32 %v573, %v583
          %v652 = vmax.f32 %v575, %v585
          %v653 = vmax.f32 %v577, %v587
          %v654 = vmax.f32 %v579, %v589
          %v655 = vmax.f32 %v651, %v593
          %v656 = vmax.f32 %v652, %v595
          %v657 = vmax.f32 %v653, %v597
          %v658 = vmax.f32 %v654, %v599
          %v659 = vmax.f32 %v655, %v603
          %v660 = vmax.f32 %v656, %v605
          %v661 = vmax.f32 %v657, %v607
          %v662 = vmax.f32 %v658, %v609
          %v663 = vmax.f32 %v659, %v613
          %v664 = vmax.f32 %v660, %v615
          %v665 = vmax.f32 %v661, %v617
          %v666 = vmax.f32 %v662, %v619
          %v667 = vmax.f32 %v663, %v623
          %v668 = vmax.f32 %v664, %v625
          %v669 = vmax.f32 %v665, %v627
          %v670 = vmax.f32 %v666, %v629
          %v671 = vmax.f32 %v667, %v633
          %v672 = vmax.f32 %v668, %v635
          %v673 = vmax.f32 %v669, %v637
          %v674 = vmax.f32 %v670, %v639
          %v675 = vmax.f32 %v671, %v643
          %v676 = vmax.f32 %v672, %v645
          %v677 = vmax.f32 %v673, %v647
          %v678 = vmax.f32 %v674, %v649
          %v679 = vmax.f32 %v675, %v676
          %v680 = vmax.f32 %v677, %v678
          %v681 = vmax.f32 %v679, %v680
          %682 = vmax.xlane.f32.xlu0 %v681
          %v683 = vpop.xlane.xlu0 %682
          %v684 = vrot.slane %v683, 4
          %v685 = vmax.f32 %v683, %v684
          %v686 = vrot.slane %v685, 2
          %v687 = vmax.f32 %v685, %v686
          %v688 = vrot.slane %v687, 1
          %v689 = vmax.f32 %v687, %v688
          %s690 = vtos %v689
          %v691 = vstv %s690
          %v692 = vmax.f32 %v486, %v691
          %v693 = vsub.f32 %v486, %v692
          %v694 = vmul.f32 %v693, 1.442695
          %v695 = vpow.pop %v694
          %v696 = vsub.f32 %v573, %v692
          %v697 = vsub.f32 %v575, %v692
          %v698 = vsub.f32 %v577, %v692
          %v699 = vsub.f32 %v579, %v692
          %v700 = vsub.f32 %v583, %v692
          %v701 = vsub.f32 %v585, %v692
          %v702 = vsub.f32 %v587, %v692
          %v703 = vsub.f32 %v589, %v692
          %v704 = vsub.f32 %v593, %v692
          %v705 = vsub.f32 %v595, %v692
          %v706 = vsub.f32 %v597, %v692
          %v707 = vsub.f32 %v599, %v692
          %v708 = vsub.f32 %v603, %v692
          %v709 = vsub.f32 %v605, %v692
          %v710 = vsub.f32 %v607, %v692
          %v711 = vsub.f32 %v609, %v692
          %v712 = vsub.f32 %v613, %v692
          %v713 = vsub.f32 %v615, %v692
          %v714 = vsub.f32 %v617, %v692
          %v715 = vsub.f32 %v619, %v692
          %v716 = vsub.f32 %v623, %v692
          %v717 = vsub.f32 %v625, %v692
          %v718 = vsub.f32 %v627, %v692
          %v719 = vsub.f32 %v629, %v692
          %v720 = vsub.f32 %v633, %v692
          %v721 = vsub.f32 %v635, %v692
          %v722 = vsub.f32 %v637, %v692
          %v723 = vsub.f32 %v639, %v692
          %v724 = vsub.f32 %v643, %v692
          %v725 = vsub.f32 %v645, %v692
          %v726 = vsub.f32 %v647, %v692
          %v727 = vsub.f32 %v649, %v692
          %v728 = vmul.f32 %v696, 1.442695
          %v729 = vpow.pop %v728
          %v730 = vmul.f32 %v697, 1.442695
          %v731 = vpow.pop %v730
          %v732 = vmul.f32 %v698, 1.442695
          %v733 = vpow.pop %v732
          %v734 = vmul.f32 %v699, 1.442695
          %v735 = vpow.pop %v734
          %v736 = vmul.f32 %v700, 1.442695
          %v737 = vpow.pop %v736
          %v738 = vmul.f32 %v701, 1.442695
          %v739 = vpow.pop %v738
          %v740 = vmul.f32 %v702, 1.442695
          %v741 = vpow.pop %v740
          %v742 = vmul.f32 %v703, 1.442695
          %v743 = vpow.pop %v742
          %v744 = vmul.f32 %v704, 1.442695
          %v745 = vpow.pop %v744
          %v746 = vmul.f32 %v705, 1.442695
          %v747 = vpow.pop %v746
          %v748 = vmul.f32 %v706, 1.442695
          %v749 = vpow.pop %v748
          %v750 = vmul.f32 %v707, 1.442695
          %v751 = vpow.pop %v750
          %v752 = vmul.f32 %v708, 1.442695
          %v753 = vpow.pop %v752
          %v754 = vmul.f32 %v709, 1.442695
          %v755 = vpow.pop %v754
          %v756 = vmul.f32 %v710, 1.442695
          %v757 = vpow.pop %v756
          %v758 = vmul.f32 %v711, 1.442695
          %v759 = vpow.pop %v758
          %v760 = vmul.f32 %v712, 1.442695
          %v761 = vpow.pop %v760
          %v762 = vmul.f32 %v713, 1.442695
          %v763 = vpow.pop %v762
          %v764 = vmul.f32 %v714, 1.442695
          %v765 = vpow.pop %v764
          %v766 = vmul.f32 %v715, 1.442695
          %v767 = vpow.pop %v766
          %v768 = vmul.f32 %v716, 1.442695
          %v769 = vpow.pop %v768
          %v770 = vmul.f32 %v717, 1.442695
          %v771 = vpow.pop %v770
          %v772 = vmul.f32 %v718, 1.442695
          %v773 = vpow.pop %v772
          %v774 = vmul.f32 %v719, 1.442695
          %v775 = vpow.pop %v774
          %v776 = vmul.f32 %v720, 1.442695
          %v777 = vpow.pop %v776
          %v778 = vmul.f32 %v721, 1.442695
          %v779 = vpow.pop %v778
          %v780 = vmul.f32 %v722, 1.442695
          %v781 = vpow.pop %v780
          %v782 = vmul.f32 %v723, 1.442695
          %v783 = vpow.pop %v782
          %v784 = vmul.f32 %v724, 1.442695
          %v785 = vpow.pop %v784
          %v786 = vmul.f32 %v725, 1.442695
          %v787 = vpow.pop %v786
          %v788 = vmul.f32 %v726, 1.442695
          %v789 = vpow.pop %v788
          %v790 = vmul.f32 %v727, 1.442695
          %v791 = vpow.pop %v790
          %v792 = vmul.f32 %v487, %v695
          %v793 = vadd.f32 %v729, %v731
          %v794 = vadd.f32 %v793, %v733
          %v795 = vadd.f32 %v794, %v735
          %v796 = vadd.f32 %v795, %v737
          %v797 = vadd.f32 %v796, %v739
          %v798 = vadd.f32 %v797, %v741
          %v799 = vadd.f32 %v798, %v743
          %v800 = vadd.f32 %v799, %v745
          %v801 = vadd.f32 %v800, %v747
          %v802 = vadd.f32 %v801, %v749
          %v803 = vadd.f32 %v802, %v751
          %v804 = vadd.f32 %v803, %v753
          %v805 = vadd.f32 %v804, %v755
          %v806 = vadd.f32 %v805, %v757
          %v807 = vadd.f32 %v806, %v759
          %v808 = vadd.f32 %v807, %v761
          %v809 = vadd.f32 %v808, %v763
          %v810 = vadd.f32 %v809, %v765
          %v811 = vadd.f32 %v810, %v767
          %v812 = vadd.f32 %v811, %v769
          %v813 = vadd.f32 %v812, %v771
          %v814 = vadd.f32 %v813, %v773
          %v815 = vadd.f32 %v814, %v775
          %v816 = vadd.f32 %v815, %v777
          %v817 = vadd.f32 %v816, %v779
          %v818 = vadd.f32 %v817, %v781
          %v819 = vadd.f32 %v818, %v783
          %v820 = vadd.f32 %v819, %v785
          %v821 = vadd.f32 %v820, %v787
          %v822 = vadd.f32 %v821, %v789
          %v823 = vadd.f32 %v822, %v791
          %824 = vadd.xlane.f32.xlu0 %v823
          %v825 = vpop.xlane.xlu0 %824
          %v826 = vrot.slane %v825, 4
          %v827 = vadd.f32 %v825, %v826
          %v828 = vrot.slane %v827, 2
          %v829 = vadd.f32 %v827, %v828
          %v830 = vrot.slane %v829, 1
          %v831 = vadd.f32 %v829, %v830
          %s832 = vtos %v831
          %v833 = vstv %s832
          %v834 = vadd.f32 %v792, %v833
          %s835 = smul.addr %s481, 4
          %s836 = scalar_lea.vmem [#allocation4], %s835
          %v837 = vld [vmem:[%s836] sm:$0xf]
          %v838 = vpack.c.bf16 %v733, %v729
          %v839 = vpack.c.bf16 %v735, %v731
          %v840 = vpack.c.bf16 %v741, %v737
          %v841 = vpack.c.bf16 %v743, %v739
          %v842 = vpack.c.bf16 %v749, %v745
          %v843 = vpack.c.bf16 %v751, %v747
          %v844 = vpack.c.bf16 %v757, %v753
          %v845 = vpack.c.bf16 %v759, %v755
          %v846 = vpack.c.bf16 %v765, %v761
          %v847 = vpack.c.bf16 %v767, %v763
          %v848 = vpack.c.bf16 %v773, %v769
          %v849 = vpack.c.bf16 %v775, %v771
          %v850 = vpack.c.bf16 %v781, %v777
          %v851 = vpack.c.bf16 %v783, %v779
          %v852 = vpack.c.bf16 %v789, %v785
          %v853 = vpack.c.bf16 %v791, %v787
          %854 = vmatprep.subr.bf16.mxu0 %v839
          %855 = vmatpush1.bf16.msra.mxu0 %v838
          %856 = vmatprep.subr.bf16.mxu0 %v841
          %857 = vmatpush1.bf16.msra.mxu0 %v840
          %858 = vmatprep.subr.bf16.mxu0 %v843
          %859 = vmatpush1.bf16.msra.mxu0 %v842
          %860 = vmatprep.subr.bf16.mxu0 %v845
          %861 = vmatpush1.bf16.msra.mxu0 %v844
          %862 = vmatprep.subr.bf16.mxu0 %v847
          %863 = vmatpush1.bf16.msra.mxu0 %v846
          %864 = vmatprep.subr.bf16.mxu0 %v849
          %865 = vmatpush1.bf16.msra.mxu0 %v848
          %866 = vmatprep.subr.bf16.mxu0 %v851
          %867 = vmatpush1.bf16.msra.mxu0 %v850
          %868 = vmatprep.subr.bf16.mxu0 %v853
          %869 = vmatpush1.bf16.msra.mxu0 %v852
          %870 = vmatprep.subr.bf16.mxu0 0
          %871 = vmatpush1.bf16.msra.mxu0 0
          %872 = vmatprep.subr.bf16.mxu0 0
          %873 = vmatpush1.bf16.msra.mxu0 0
          %874 = vmatprep.subr.bf16.mxu0 0
          %875 = vmatpush1.bf16.msra.mxu0 0
          %876 = vmatprep.subr.bf16.mxu0 0
          %877 = vmatpush1.bf16.msra.mxu0 0
          %878 = vmatprep.subr.bf16.mxu0 0
          %879 = vmatpush1.bf16.msra.mxu0 0
          %880 = vmatprep.subr.bf16.mxu0 0
          %881 = vmatpush1.bf16.msra.mxu0 0
          %882 = vmatprep.subr.bf16.mxu0 0
          %883 = vmatpush1.bf16.msra.mxu0 0
          %884 = vmatprep.subr.bf16.mxu0 0
          %885 = vmatpush1.bf16.msra.mxu0 0
          %886 = vmatprep.mubr.bf16.mxu0 0
          %887 = vmatmul.mubr.bf16.gmra.mrb[0].mxu0 %v837
          %v888 = vpop.f32.mrb[0].mxu0
          %v889 = vadd.f32 0.0, %v888
          %v890 = vpop.f32.mrb[0].mxu0
          %v891 = vadd.f32 0.0, %v890
          %v892 = vpop.f32.mrb[0].mxu0
          %v893 = vpop.f32.mrb[0].mxu0
          %894 = vdwg.mxu0
          %v895 = vld [vmem:[#allocation5] sm:$0xff]
          %v896 = vld [vmem:[#allocation5 + $0x8] sm:$0xff]
          %v897 = vmul.f32 %v895, %v695
          %v898 = vmul.f32 %v896, %v695
          %v899 = vadd.f32 %v897, %v889
          %v900 = vadd.f32 %v898, %v891
          %901 = vst [vmem:[#allocation5] sm:$0xff] %v899
          %902 = vst [vmem:[#allocation5 + $0x8] sm:$0xff] %v900
        $region49: #{tpu_custom_call.1} parent=43 // loop_footer
          %s485 = sadd.s32 1, %s481
        $region50: #{tpu_custom_call.1} parent=43 // loop_footer_branch
          %480 = sbr.rel target = $region46
        $region51: #{tpu_custom_call.1} parent=43 // loop_exit
          _
        %v903 = vld [vmem:[#allocation5] sm:$0xff]
        %v904 = vld [vmem:[#allocation5 + $0x8] sm:$0xff]
        %v905 = vrcp.pop %v487
        %v906 = vmul.f32 %v903, %v905
        %v907 = vmul.f32 %v904, %v905
        %v908 = vld [vmem:[%s3] sm:$0xff]
        %v909 = vld [vmem:[%s4] sm:$0xff]
        %911 = vset.pattern.permute.xlu0 0
        %912 = vperm.xlu0 %911, %v909
        %v913 = vpop.permute.xlu0 %912
        %v916 = vsel %vm275, %v908, 0
        %918 = vmatprep.subr.mxu0 %v907
        %919 = vmatpush1.msra.mxu0 %v906
        %920 = vmatprep.subr.mxu0 0.0
        %921 = vmatpush1.msra.mxu0 0.0
        %922 = vmatprep.subr.mxu0 0.0
        %923 = vmatpush1.msra.mxu0 0.0
        %924 = vmatprep.subr.mxu0 0.0
        %925 = vmatpush1.msra.mxu0 0.0
        %926 = vmatprep.subr.mxu0 0.0
        %927 = vmatpush1.msra.mxu0 0.0
        %928 = vmatprep.subr.mxu0 0.0
        %929 = vmatpush1.msra.mxu0 0.0
        %930 = vmatprep.subr.mxu0 0.0
        %931 = vmatpush1.msra.mxu0 0.0
        %932 = vmatprep.subr.mxu0 0.0
        %933 = vmatpush1.msra.mxu0 0.0
        %934 = vmatprep.subr.mxu0 0.0
        %935 = vmatpush1.msra.mxu0 0.0
        %936 = vmatprep.subr.mxu0 0.0
        %937 = vmatpush1.msra.mxu0 0.0
        %938 = vmatprep.subr.mxu0 0.0
        %939 = vmatpush1.msra.mxu0 0.0
        %940 = vmatprep.subr.mxu0 0.0
        %941 = vmatpush1.msra.mxu0 0.0
        %942 = vmatprep.subr.mxu0 0.0
        %943 = vmatpush1.msra.mxu0 0.0
        %944 = vmatprep.subr.mxu0 0.0
        %945 = vmatpush1.msra.mxu0 0.0
        %946 = vmatprep.subr.mxu0 0.0
        %947 = vmatpush1.msra.mxu0 0.0
        %948 = vmatprep.subr.mxu0 0.0
        %949 = vmatpush1.msra.mxu0 0.0
        %950 = vmatprep.subr.mxu0 0.0
        %951 = vmatpush1.msra.mxu0 0.0
        %952 = vmatprep.subr.mxu0 0.0
        %953 = vmatpush1.msra.mxu0 0.0
        %954 = vmatprep.subr.mxu0 0.0
        %955 = vmatpush1.msra.mxu0 0.0
        %956 = vmatprep.subr.mxu0 0.0
        %957 = vmatpush1.msra.mxu0 0.0
        %958 = vmatprep.subr.mxu0 0.0
        %959 = vmatpush1.msra.mxu0 0.0
        %960 = vmatprep.subr.mxu0 0.0
        %961 = vmatpush1.msra.mxu0 0.0
        %962 = vmatprep.subr.mxu0 0.0
        %963 = vmatpush1.msra.mxu0 0.0
        %964 = vmatprep.subr.mxu0 0.0
        %965 = vmatpush1.msra.mxu0 0.0
        %966 = vmatprep.subr.mxu0 0.0
        %967 = vmatpush1.msra.mxu0 0.0
        %968 = vmatprep.subr.mxu0 0.0
        %969 = vmatpush1.msra.mxu0 0.0
        %970 = vmatprep.subr.mxu0 0.0
        %971 = vmatpush1.msra.mxu0 0.0
        %972 = vmatprep.subr.mxu0 0.0
        %973 = vmatpush1.msra.mxu0 0.0
        %974 = vmatprep.subr.mxu0 0.0
        %975 = vmatpush1.msra.mxu0 0.0
        %976 = vmatprep.subr.mxu0 0.0
        %977 = vmatpush1.msra.mxu0 0.0
        %978 = vmatprep.subr.mxu0 0.0
        %979 = vmatpush1.msra.mxu0 0.0
        %980 = vmatprep.subr.mxu0 0.0
        %981 = vmatpush1.msra.mxu0 0.0
        %982 = vmatprep.mubr.f32.mxu0 0.0
        %983 = vmatmul.mubr.f32.gmra.mrb[0].mxu0 %v916
        %v984 = vpop.f32.mrb[0].mxu0
        %v985 = vadd.f32 %v913, %v984
        %v986 = vpop.f32.mrb[0].mxu0
        %v987 = vadd.f32 %v913, %v986
        %988 = vdwg.mxu0
        %s989 = sld [smem:[#allocation6]]
        %v990 = vstv %s989
        %v991 = vmul.f32 %v990, %v985
        %v992 = vmul.f32 %v990, %v987
        %v993 = vadd.f32 %v991, %v252
        %v994 = vadd.f32 %v992, %v253
        %995 = vst [vmem:[%s245] sm:$0xff] %v993
        %996 = vst [vmem:[%s245 + $0x8] sm:$0xff] %v994
        %s997 = sand.u32 %s160, 1
        %s998 = scalar_lea.sflag [#allocation8], %s997
        %s999 = sand.u32 %s160, 1
        %s1000 = smul.addr %s999, 16
        %s1001 = scalar_lea.vmem [#allocation7], %s1000
        // Predicated region
        $region52: #{tpu_custom_call.1} parent=43 // pred_check
          %p1002 = pneg %p170
        $region53: #{tpu_custom_call.1} parent=43 // pred_check_branch
          %1004 = sbr.rel (%p1002) target = $region55
        $region54: #{tpu_custom_call.1} parent=43 // pred_region
          %s1006 = ssub.s32 256, 256
          %1007 = vsyncadd %s998, %s1006
          %s1008 = smul.addr %s21, 2
          %s1009 = smul.addr %s1008, 128
          %s1010 = scalar_lea.hbm %s6, %s1009
          %s1012 = sshll.u32 %s1001, 4
          %s1013 = int_to_ptr.vmem [resolvable:$true] %s1012
          %1015 = dma.vmem_to_hbm [thread:$0]  %s1013, 256, %s1010, %s998
        $region55: #{tpu_custom_call.1} parent=43 // pred_fallthru
          _
      $region44: #{tpu_custom_call.1} parent=5 // pred_fallthru
        _
      %p1016 = scmp.le.s32.totalorder 2, %s16
      // Predicated region
      $region56: #{tpu_custom_call.1} parent=5 // pred_check
        %p1017 = pneg %p1016
      $region57: #{tpu_custom_call.1} parent=5 // pred_check_branch
        %1019 = sbr.rel (%p1017) target = $region59
      $region58: #{tpu_custom_call.1} parent=5 // pred_region
        %s1020 = ssub.s32 %s16, 2
        // Predicated region
        $region60: #{tpu_custom_call.1} parent=58 // pred_check
          %p1021 = pneg %p176
        $region61: #{tpu_custom_call.1} parent=58 // pred_check_branch
          %1023 = sbr.rel (%p1021) target = $region63
        $region62: #{tpu_custom_call.1} parent=58 // pred_region
          %s1024 = sand.u32 %s161, 1
          %s1025 = scalar_lea.sflag [#allocation8], %s1024
          %s1026 = sand.u32 %s161, 1
          %s1027 = smul.addr %s1026, 16
          %s1028 = scalar_lea.vmem [#allocation7], %s1027
          %1029 = dma.done %s1025, 256
        $region63: #{tpu_custom_call.1} parent=58 // pred_fallthru
          _
      $region59: #{tpu_custom_call.1} parent=5 // pred_fallthru
        _
    $region6: #{tpu_custom_call.1} parent=1 // loop_footer
      %s20 = sadd.s32 1, %s16
    $region7: #{tpu_custom_call.1} parent=1 // loop_footer_branch
      %15 = sbr.rel target = $region3
    $region8: #{tpu_custom_call.1} parent=1 // loop_exit
      _
    %1030 = vsyncpa [#allocation8], 1
    %s1031 = scalar_lea.sflag [#allocation8], 1
    %1032 = vsyncpa %s1031, 1

</llo_original>
